<compile_context>
chip_gen: v5e
topology: v5e:2x2
jax: 0.10.0
libtpu: 0.0.40
codegen_flags: <defaults>
</compile_context>

<pallas_src>
import math

import jax
import jax.numpy as jnp
from jax.experimental import pallas as pl
from jax.experimental.pallas import tpu as pltpu

_LANE = 128
_SUBLANE = 8
_INV_SQRT2 = 1.0 / math.sqrt(2.0)


def _round_up(n, m):
    return ((n + m - 1) // m) * m


def _vmem_capacity_bytes():
    """Generation-aware VMEM capacity (64 MiB fallback is safe on v7x)."""
    try:
        info = pltpu.get_tpu_info()
        cap = getattr(info, "vmem_capacity_bytes", None)
        if cap:
            return int(cap)
    except Exception:
        pass
    return 64 * 1024 * 1024


def _pick_hidden_tile(hid_p, max_th):
    """Largest multiple-of-128 divisor of hid_p that is <= max_th (>=128)."""
    best = _LANE
    d = _LANE
    limit = min(hid_p, max(max_th, _LANE))
    while d <= limit:
        if hid_p % d == 0:
            best = d
        d += _LANE
    return best


def _gelu_exact(h):
    # Exact erf-based GELU (matches torch.nn.GELU() default), computed in f32.
    return 0.5 * h * (1.0 + jax.lax.erf(h * _INV_SQRT2))


# --------------------------------------------------------------------------
# Kernels
# --------------------------------------------------------------------------
def _mlp_kernel_single(x_ref, w1_ref, b1_ref, w2_ref, b2_ref, o_ref):
    """Whole hidden dim in one tile: no scratch, no init, single output write."""
    h = jnp.dot(x_ref[...], w1_ref[...], preferred_element_type=jnp.float32)
    h = _gelu_exact(h + b1_ref[...])
    out = jnp.dot(h.astype(w2_ref.dtype), w2_ref[...],
                  preferred_element_type=jnp.float32)
    o_ref[...] = (out + b2_ref[...]).astype(o_ref.dtype)


def _mlp_kernel_acc(x_ref, w1_ref, b1_ref, w2_ref, b2_ref, o_ref, acc_ref):
    """Hidden dim tiled on grid axis 1 (reduction) with an f32 accumulator."""
    h_idx = pl.program_id(1)

    h = jnp.dot(x_ref[...], w1_ref[...], preferred_element_type=jnp.float32)
    h = _gelu_exact(h + b1_ref[...])
    partial = jnp.dot(h.astype(w2_ref.dtype), w2_ref[...],
                      preferred_element_type=jnp.float32)

    # Initialize with the first partial product (avoids zero-fill + RMW).
    @pl.when(h_idx == 0)
    def _init():
        acc_ref[...] = partial

    @pl.when(h_idx > 0)
    def _accum():
        acc_ref[...] += partial

    @pl.when(h_idx == pl.num_programs(1) - 1)
    def _finalize():
        o_ref[...] = (acc_ref[...] + b2_ref[...]).astype(o_ref.dtype)


# --------------------------------------------------------------------------
# Parameter preparation (hoisted off the per-call hot path)
# --------------------------------------------------------------------------
def prepare_mlp_params(w1, b1, w2, b2, *, compute_dtype=jnp.bfloat16):
    """Pad weights to 128-lane multiples and cast to the MXU dtype ONCE."""
    input_dim, hidden_dim = w1.shape
    hidden_dim2, output_dim = w2.shape
    assert hidden_dim == hidden_dim2
    in_p = _round_up(input_dim, _LANE)
    hid_p = _round_up(hidden_dim, _LANE)
    out_p = _round_up(output_dim, _LANE)

    cd = jnp.dtype(compute_dtype)
    w1_p = jnp.pad(w1, ((0, in_p - input_dim), (0, hid_p - hidden_dim))).astype(cd)
    w2_p = jnp.pad(w2, ((0, hid_p - hidden_dim), (0, out_p - output_dim))).astype(cd)
    b1_p = jnp.pad(b1, (0, hid_p - hidden_dim)).astype(jnp.float32).reshape(1, hid_p)
    b2_p = jnp.pad(b2, (0, out_p - output_dim)).astype(jnp.float32).reshape(1, out_p)
    return dict(w1=w1_p, b1=b1_p, w2=w2_p, b2=b2_p,
                input_dim=input_dim, hidden_dim=hidden_dim, output_dim=output_dim,
                in_p=in_p, hid_p=hid_p, out_p=out_p, compute_dtype=cd)


# --------------------------------------------------------------------------
# Forward (hot path)
# --------------------------------------------------------------------------
def mlp_apply(x, params, *, tm=512, th=512):
    """Pallas MLP forward with pre-prepared params. x: [..., in] -> [..., out]."""
    orig_shape = x.shape
    out_dtype = x.dtype
    input_dim = params["input_dim"]
    hidden_dim = params["hidden_dim"]
    output_dim = params["output_dim"]
    in_p, hid_p, out_p = params["in_p"], params["hid_p"], params["out_p"]
    cd = params["compute_dtype"]

    x2d = x.reshape(-1, input_dim)
    M = x2d.shape[0]

    # Sub-32-bit dtypes pack rows along sublanes: bf16 minimum row tile is 16,
    # 8-bit is 32.
    isz_c = jnp.dtype(cd).itemsize
    isz_o = jnp.dtype(out_dtype).itemsize
    row_align = max(_SUBLANE, 32 // isz_c)

    # ---- row tile ----------------------------------------------------------
    tm = max(row_align, min(_round_up(tm, row_align), _round_up(M, row_align)))
    # Prefer >= 2 row tiles so both v7x TensorCores get "parallel" work.
    while _round_up(M, tm) // tm < 2 and tm > max(row_align, 128):
        tm = max(row_align, _round_up(tm // 2, row_align))

    # ---- hidden tile: multiple-of-128 divisor of hid_p (no extra padding) ---
    th = _pick_hidden_tile(hid_p, max(_LANE, th))

    # ---- VMEM budget (double-buffered pipelined refs) ------------------------
    def footprint(tm_, th_):
        f = (2 * tm_ * in_p * isz_c            # x tiles
             + 2 * in_p * th_ * isz_c          # W1 tiles
             + 2 * _SUBLANE * th_ * 4          # b1 (sublane padded)
             + 2 * th_ * out_p * isz_c         # W2 tiles
             + 2 * _SUBLANE * out_p * 4        # b2
             + 2 * tm_ * out_p * isz_o)        # out tiles
        if hid_p // th_ > 1:
            f += tm_ * out_p * 4               # f32 accumulator scratch
        return f

    cap = _vmem_capacity_bytes()
    budget = int(cap * 0.75)
    while footprint(tm, th) > budget:
        if th > _LANE:
            th = _pick_hidden_tile(hid_p, th // 2)
        elif tm > row_align:
            tm = max(row_align, _round_up(tm // 2, row_align))
        else:
            # TODO(synk): for very large out_p on v7x, add a third ("parallel")
            # grid axis tiling the output dim instead of shrinking further.
            break

    fp = footprint(tm, th)
    vmem_limit = int(min(max(fp * 7 // 5, 32 * 1024 * 1024), budget))
    vmem_limit = min(max(vmem_limit, fp + (2 << 20)), cap)

    # ---- pad x only when necessary (per-call cost kept minimal) -------------
    M_p = _round_up(M, tm)
    x_p = x2d
    if (M_p != M) or (in_p != input_dim):
        x_p = jnp.pad(x2d, ((0, M_p - M), (0, in_p - input_dim)))
    if x_p.dtype != cd:
        x_p = x_p.astype(cd)

    n_h = hid_p // th
    grid = (M_p // tm, n_h)

    cost = pl.CostEstimate(
        flops=2 * M * (input_dim * hidden_dim + hidden_dim * output_dim),
        transcendentals=M * hidden_dim,
        bytes_accessed=(M * input_dim * isz_c
                        + (input_dim * hidden_dim + hidden_dim * output_dim) * isz_c
                        + (hidden_dim + output_dim) * 4
                        + M * output_dim * isz_o),
    )

    in_specs = [
        pl.BlockSpec((tm, in_p), lambda i, h: (i, 0)),      # x rows
        pl.BlockSpec((in_p, th), lambda i, h: (0, h)),      # W1 column tile
        pl.BlockSpec((1, th), lambda i, h: (0, h)),         # b1 tile
        pl.BlockSpec((th, out_p), lambda i, h: (h, 0)),     # W2 row tile
        pl.BlockSpec((1, out_p), lambda i, h: (0, 0)),      # b2
    ]
    out_spec = pl.BlockSpec((tm, out_p), lambda i, h: (i, 0))

    if n_h == 1:
        kernel = _mlp_kernel_single
        scratch = []
    else:
        kernel = _mlp_kernel_acc
        scratch = [pltpu.VMEM((tm, out_p), jnp.float32)]

    out2d = pl.pallas_call(
        kernel,
        out_shape=jax.ShapeDtypeStruct((M_p, out_p), out_dtype),
        grid_spec=pltpu.PrefetchScalarGridSpec(
            num_scalar_prefetch=0,
            grid=grid,
            in_specs=in_specs,
            out_specs=out_spec,
            scratch_shapes=scratch,
        ),
        compiler_params=pltpu.CompilerParams(
            dimension_semantics=("parallel", "arbitrary"),
            vmem_limit_bytes=vmem_limit,
        ),
        cost_estimate=cost,
    )(x_p, params["w1"], params["b1"], params["w2"], params["b2"])

    out = out2d[:M, :output_dim]
    return out.reshape(*orig_shape[:-1], output_dim)


def mlp_forward(x, w1, b1, w2, b2, *, tm=512, th=512,
                compute_dtype=jnp.bfloat16):
    """Convenience wrapper (pads/casts weights per call; prefer prepare+apply)."""
    params = prepare_mlp_params(w1, b1, w2, b2, compute_dtype=compute_dtype)
    return mlp_apply(x, params, tm=tm, th=th)


# --------------------------------------------------------------------------
# Reference / init helpers
# --------------------------------------------------------------------------
def init_mlp_params(key, input_dim, output_dim, widening_factor=1,
                    dtype=jnp.float32):
    """Mimics PyTorch nn.Linear default init U(-1/sqrt(fan_in), +1/sqrt(fan_in))."""
    hidden = output_dim * widening_factor
    k1, k2, k3, k4 = jax.random.split(key, 4)
    lim1 = 1.0 / math.sqrt(input_dim)
    lim2 = 1.0 / math.sqrt(hidden)
    w1 = jax.random.uniform(k1, (input_dim, hidden), dtype, -lim1, lim1)
    b1 = jax.random.uniform(k2, (hidden,), dtype, -lim1, lim1)
    w2 = jax.random.uniform(k3, (hidden, output_dim), dtype, -lim2, lim2)
    b2 = jax.random.uniform(k4, (output_dim,), dtype, -lim2, lim2)
    return w1, b1, w2, b2


def _mlp_ref(x, w1, b1, w2, b2):
    h = x @ w1 + b1
    h = 0.5 * h * (1.0 + jax.lax.erf(h / math.sqrt(2.0)))
    return h @ w2 + b2


if __name__ == "__main__":
    key = jax.random.PRNGKey(0)
    k_x, k_p, k_x2, k_p2, k_p3 = jax.random.split(key, 5)

    # Test 1: module-spec shapes (batch=2, seq=8, dims=32, widening=1),
    # default bf16 MXU path with weights prepared once (hot-path API).
    batch, seq = 2, 8
    input_dim, output_dim, widening_factor = 32, 32, 1
    x = jax.random.normal(k_x, (batch, seq, input_dim), jnp.float32)
    w1, b1, w2, b2 = init_mlp_params(k_p, input_dim, output_dim, widening_factor)
    out_ref = _mlp_ref(x, w1, b1, w2, b2)

    params_bf16 = prepare_mlp_params(w1, b1, w2, b2)        # bf16 default
    out_bf16 = jax.block_until_ready(mlp_apply(x, params_bf16))
    assert out_bf16.shape == (batch, seq, output_dim)
    assert jnp.allclose(out_bf16, out_ref, atol=5e-2, rtol=5e-2)

    # Test 2: exact f32 path matches the PyTorch reference tightly.
    params_f32 = prepare_mlp_params(w1, b1, w2, b2, compute_dtype=jnp.float32)
    out_f32 = jax.block_until_ready(mlp_apply(x, params_f32))
    assert jnp.allclose(out_f32, out_ref, atol=1e-4, rtol=1e-4)

    # Test 3: ragged, non-128-aligned shapes exercise the padding path.
    x2 = jax.random.normal(k_x2, (3, 5, 40), jnp.float32)
    p2 = init_mlp_params(k_p2, 40, 24, 2)
    out2 = jax.block_until_ready(
        mlp_forward(x2, *p2, compute_dtype=jnp.float32))
    assert out2.shape == (3, 5, 24)
    assert jnp.allclose(out2, _mlp_ref(x2, *p2), atol=1e-4, rtol=1e-4)

    # Test 4: multi-tile hidden reduction (accumulator kernel path).
    x3 = jax.random.normal(k_x, (batch, seq, 64), jnp.float32)
    p3 = init_mlp_params(k_p3, 64, 128, 2)                  # hidden = 256
    out3 = jax.block_until_ready(
        mlp_forward(x3, *p3, th=128, compute_dtype=jnp.float32))
    assert out3.shape == (batch, seq, 128)
    assert jnp.allclose(out3, _mlp_ref(x3, *p3), atol=1e-4, rtol=1e-4)

    print("KERNEL_OK")
</pallas_src>

<mosaic_0001>
module attributes {stable_mosaic.version = 11 : i64} {
  func.func @_mlp_kernel_single(%arg0: i32, %arg1: i32, %arg2: memref<16x128xbf16, #tpu.memory_space<vmem>>, %arg3: memref<128x128xbf16, #tpu.memory_space<vmem>>, %arg4: memref<1x128xf32, #tpu.memory_space<vmem>>, %arg5: memref<128x128xbf16, #tpu.memory_space<vmem>>, %arg6: memref<1x128xf32, #tpu.memory_space<vmem>>, %arg7: memref<16x128xf32, #tpu.memory_space<vmem>>) attributes {dimension_semantics = [#tpu.dimension_semantics<parallel>, #tpu.dimension_semantics<arbitrary>], iteration_bounds = array<i64: 1, 1>, scalar_prefetch = 0 : i64, scratch_operands = 0 : i64, tpu.core_type = #tpu.core_type<tc>, window_params = [{transform_indices = @transform_0, window_bounds = array<i64: 16, 128>}, {transform_indices = @transform_1, window_bounds = array<i64: 128, 128>}, {transform_indices = @transform_2, window_bounds = array<i64: 1, 128>}, {transform_indices = @transform_3, window_bounds = array<i64: 128, 128>}, {pipeline_mode = #tpu.pipeline_mode<synchronous>, transform_indices = @transform_4, window_bounds = array<i64: 1, 128>}, {transform_indices = @transform_5, window_bounds = array<i64: 16, 128>}]} {
    %c0 = arith.constant 0 : index
    %c0_0 = arith.constant 0 : index
    %0 = vector.load %arg2[%c0, %c0_0] : memref<16x128xbf16, #tpu.memory_space<vmem>>, vector<16x128xbf16>
    %c0_1 = arith.constant 0 : index
    %c0_2 = arith.constant 0 : index
    %1 = vector.load %arg3[%c0_1, %c0_2] : memref<128x128xbf16, #tpu.memory_space<vmem>>, vector<128x128xbf16>
    %cst = arith.constant dense<0.000000e+00> : vector<16x128xf32>
    %2 = tpu.matmul %0, %1, %cst {dimension_numbers = #tpu.dot_dimension_numbers<[1], [0], [0], [1], [0, 0, 1, 1], [], []>} : vector<16x128xbf16>, vector<128x128xbf16>, vector<16x128xf32> -> vector<16x128xf32>
    %c0_3 = arith.constant 0 : index
    %c0_4 = arith.constant 0 : index
    %3 = vector.load %arg4[%c0_3, %c0_4] : memref<1x128xf32, #tpu.memory_space<vmem>>, vector<1x128xf32>
    %4 = vector.broadcast %3 : vector<1x128xf32> to vector<16x128xf32>
    %5 = arith.addf %2, %4 : vector<16x128xf32>
    %cst_5 = arith.constant 5.000000e-01 : f32
    %6 = vector.broadcast %cst_5 : f32 to vector<16x128xf32>
    %7 = arith.mulf %6, %5 : vector<16x128xf32>
    %cst_6 = arith.constant 0.707106769 : f32
    %8 = vector.broadcast %cst_6 : f32 to vector<16x128xf32>
    %9 = arith.mulf %5, %8 : vector<16x128xf32>
    %10 = math.erf %9 : vector<16x128xf32>
    %cst_7 = arith.constant 1.000000e+00 : f32
    %11 = vector.broadcast %cst_7 : f32 to vector<16x128xf32>
    %12 = arith.addf %11, %10 : vector<16x128xf32>
    %13 = arith.mulf %7, %12 : vector<16x128xf32>
    %14 = arith.truncf %13 : vector<16x128xf32> to vector<16x128xbf16>
    %c0_8 = arith.constant 0 : index
    %c0_9 = arith.constant 0 : index
    %15 = vector.load %arg5[%c0_8, %c0_9] : memref<128x128xbf16, #tpu.memory_space<vmem>>, vector<128x128xbf16>
    %cst_10 = arith.constant dense<0.000000e+00> : vector<16x128xf32>
    %16 = tpu.matmul %14, %15, %cst_10 {dimension_numbers = #tpu.dot_dimension_numbers<[1], [0], [0], [1], [0, 0, 1, 1], [], []>} : vector<16x128xbf16>, vector<128x128xbf16>, vector<16x128xf32> -> vector<16x128xf32>
    %c0_11 = arith.constant 0 : index
    %c0_12 = arith.constant 0 : index
    %17 = vector.load %arg6[%c0_11, %c0_12] : memref<1x128xf32, #tpu.memory_space<vmem>>, vector<1x128xf32>
    %18 = vector.broadcast %17 : vector<1x128xf32> to vector<16x128xf32>
    %19 = arith.addf %16, %18 : vector<16x128xf32>
    %c0_13 = arith.constant 0 : index
    %c0_14 = arith.constant 0 : index
    %20 = vector.load %arg7[%c0_13, %c0_14] : memref<16x128xf32, #tpu.memory_space<vmem>>, vector<16x128xf32>
    tpu.vector_store %arg7[%c0_13, %c0_14], %19 {strides = array<i32>} : memref<16x128xf32, #tpu.memory_space<vmem>>, vector<16x128xf32>,
    return
  }
  func.func @transform_0(%arg0: i32, %arg1: i32) -> (i32, i32) {
    %c0_i32 = arith.constant 0 : i32
    %c0_i32_0 = arith.constant 0 : i32
    return %arg0, %c0_i32 : i32, i32
  }
  func.func @transform_1(%arg0: i32, %arg1: i32) -> (i32, i32) {
    %c0_i32 = arith.constant 0 : i32
    %c0_i32_0 = arith.constant 0 : i32
    return %c0_i32, %arg1 : i32, i32
  }
  func.func @transform_2(%arg0: i32, %arg1: i32) -> (i32, i32) {
    %c0_i32 = arith.constant 0 : i32
    %c0_i32_0 = arith.constant 0 : i32
    return %c0_i32, %arg1 : i32, i32
  }
  func.func @transform_3(%arg0: i32, %arg1: i32) -> (i32, i32) {
    %c0_i32 = arith.constant 0 : i32
    %c0_i32_0 = arith.constant 0 : i32
    return %arg1, %c0_i32 : i32, i32
  }
  func.func @transform_4(%arg0: i32, %arg1: i32) -> (i32, i32) {
    %c0_i32 = arith.constant 0 : i32
    %c0_i32_0 = arith.constant 0 : i32
    %c0_i32_1 = arith.constant 0 : i32
    return %c0_i32, %c0_i32_0 : i32, i32
  }
  func.func @transform_5(%arg0: i32, %arg1: i32) -> (i32, i32) {
    %c0_i32 = arith.constant 0 : i32
    %c0_i32_0 = arith.constant 0 : i32
    return %arg0, %c0_i32 : i32, i32
  }
}

</mosaic_0001>

<llo_original>
// kernel: tpu_custom_call.1
$region0: #{tpu_custom_call.1}
  #allocation0 [shape = 'u32[]', space=smem, size = 0x4, offset = 0x4, fixed_abs, tag = 'smem constant byte address 0x4 - core index']
  #allocation1 [shape = 'u32[72,128]{1,0:T(1,128)}', space=vmem, size = 0x9000, scoped, tag = 'internal scratch']
  %s0 = inlined_call_operand.hbm [shape: bf16[16,128], index: 0, kind: input, shape index: {}]
  %s1 = inlined_call_operand.hbm [shape: bf16[128,128], index: 1, kind: input, shape index: {}]
  %s2 = inlined_call_operand.vmem [shape: f32[1,128], index: 2, kind: input, shape index: {}]
  %s3 = inlined_call_operand.hbm [shape: bf16[128,128], index: 3, kind: input, shape index: {}]
  %s4 = inlined_call_operand.vmem [shape: f32[1,128], index: 4, kind: input, shape index: {}]
  %s5 = inlined_call_operand.hbm [shape: f32[16,128], index: 5, kind: output, shape index: {}]
  %s6 = sld [smem:[#allocation0]]
  $region42: #{tpu_custom_call.1} parent=0
    _
  %s8 = ssub.s32 1, %s6
  %s9 = scalar_select 0, %s8, %s6
  $region1: #{tpu_custom_call.1} parent=0
    #allocation2 [shape = 'u8[4096]{0}', space=vmem, size = 0x1000, scoped, tag = 'input window, operand 0, single buffered']
    #allocation3 [shape = 's32[1]{0}', space=sflag, size = 0x4, scoped, tag = 'scoped memory for tpu_custom_call.1']
    #allocation4 [shape = 's32[1]{0}', space=sflag, size = 0x4, scoped, tag = 'scoped memory for tpu_custom_call.1']
    #allocation5 [shape = 'u8[32768]{0}', space=vmem, size = 0x8000, scoped, tag = 'input window, operand 1, single buffered']
    #allocation6 [shape = 's32[1]{0}', space=sflag, size = 0x4, scoped, tag = 'scoped memory for tpu_custom_call.1']
    #allocation7 [shape = 'u8[32768]{0}', space=vmem, size = 0x8000, scoped, tag = 'input window, operand 3, single buffered']
    #allocation8 [shape = 'u8[8192]{0}', space=vmem, size = 0x2000, scoped, tag = 'output window, operand 0, single buffered']
    %10 = vsyncpa [#allocation3], 0
    %11 = vsyncpa [#allocation6], 0
    %12 = vsyncpa [#allocation4], 0
    // Predicated region
    $region2: #{tpu_custom_call.1} parent=1 // pred_check
      _
    $region3: #{tpu_custom_call.1} parent=1 // pred_check_branch
      %14 = sbr.rel (0) target = $region5
    $region4: #{tpu_custom_call.1} parent=1 // pred_region
      %16 = vsyncadd [#allocation3], 0
      %s17 = sshll.u32 %s0, 4
      %s18 = int_to_ptr.hbm [resolvable:$true] %s17
      %s19 = sshll.u32 [#allocation2], 4
      %s20 = int_to_ptr.vmem [resolvable:$true] %s19
      %25 = dma.hbm_to_vmem [thread:$0]  %s18, 128, %s20, [#allocation3], 64, 64, 4
    $region5: #{tpu_custom_call.1} parent=1 // pred_fallthru
      _
    // Predicated region
    $region6: #{tpu_custom_call.1} parent=1 // pred_check
      _
    $region7: #{tpu_custom_call.1} parent=1 // pred_check_branch
      %27 = sbr.rel (0) target = $region9
    $region8: #{tpu_custom_call.1} parent=1 // pred_region
      %29 = vsyncadd [#allocation6], 0
      %s30 = sshll.u32 %s1, 4
      %s31 = int_to_ptr.hbm [resolvable:$true] %s30
      %s32 = sshll.u32 [#allocation5], 4
      %s33 = int_to_ptr.vmem [resolvable:$true] %s32
      %38 = dma.hbm_to_vmem [thread:$0]  %s31, 1024, %s33, [#allocation6], 64, 64, 4
    $region9: #{tpu_custom_call.1} parent=1 // pred_fallthru
      _
    // Predicated region
    $region10: #{tpu_custom_call.1} parent=1 // pred_check
      _
    $region11: #{tpu_custom_call.1} parent=1 // pred_check_branch
      %40 = sbr.rel (0) target = $region13
    $region12: #{tpu_custom_call.1} parent=1 // pred_region
      _
    $region13: #{tpu_custom_call.1} parent=1 // pred_fallthru
      _
    // Predicated region
    $region14: #{tpu_custom_call.1} parent=1 // pred_check
      _
    $region15: #{tpu_custom_call.1} parent=1 // pred_check_branch
      %42 = sbr.rel (0) target = $region17
    $region16: #{tpu_custom_call.1} parent=1 // pred_region
      %44 = vsyncadd [#allocation6], 0
      %s45 = sshll.u32 %s3, 4
      %s46 = int_to_ptr.hbm [resolvable:$true] %s45
      %s47 = sshll.u32 [#allocation7], 4
      %s48 = int_to_ptr.vmem [resolvable:$true] %s47
      %53 = dma.hbm_to_vmem [thread:$0]  %s46, 1024, %s48, [#allocation6], 64, 64, 4
    $region17: #{tpu_custom_call.1} parent=1 // pred_fallthru
      _
    // Predicated region
    $region18: #{tpu_custom_call.1} parent=1 // pred_check
      _
    $region19: #{tpu_custom_call.1} parent=1 // pred_check_branch
      %55 = sbr.rel (0) target = $region21
    $region20: #{tpu_custom_call.1} parent=1 // pred_region
      _
    $region21: #{tpu_custom_call.1} parent=1 // pred_fallthru
      _
    // Predicated region
    $region22: #{tpu_custom_call.1} parent=1 // pred_check
      _
    $region23: #{tpu_custom_call.1} parent=1 // pred_check_branch
      %57 = sbr.rel (0) target = $region25
    $region24: #{tpu_custom_call.1} parent=1 // pred_region
      %59 = dma.done [#allocation3], 128
    $region25: #{tpu_custom_call.1} parent=1 // pred_fallthru
      _
    // Predicated region
    $region26: #{tpu_custom_call.1} parent=1 // pred_check
      _
    $region27: #{tpu_custom_call.1} parent=1 // pred_check_branch
      %61 = sbr.rel (0) target = $region29
    $region28: #{tpu_custom_call.1} parent=1 // pred_region
      %63 = dma.done [#allocation6], 1024
    $region29: #{tpu_custom_call.1} parent=1 // pred_fallthru
      _
    // Predicated region
    $region30: #{tpu_custom_call.1} parent=1 // pred_check
      _
    $region31: #{tpu_custom_call.1} parent=1 // pred_check_branch
      %65 = sbr.rel (0) target = $region33
    $region32: #{tpu_custom_call.1} parent=1 // pred_region
      %67 = dma.done [#allocation6], 1024
    $region33: #{tpu_custom_call.1} parent=1 // pred_fallthru
      _
    %v68 = vld [vmem:[#allocation2] sm:$0xf]
    %v69 = vld [vmem:[#allocation2 + $0x4] sm:$0xf]
    %v70 = vld [vmem:[#allocation5] sm:$0xf]
    %v71 = vld [vmem:[#allocation5 + $0x4] sm:$0xf]
    %v72 = vld [vmem:[#allocation5 + $0x8] sm:$0xf]
    %v73 = vld [vmem:[#allocation5 + $0xc] sm:$0xf]
    %v74 = vld [vmem:[#allocation5 + $0x10] sm:$0xf]
    %v75 = vld [vmem:[#allocation5 + $0x14] sm:$0xf]
    %v76 = vld [vmem:[#allocation5 + $0x18] sm:$0xf]
    %v77 = vld [vmem:[#allocation5 + $0x1c] sm:$0xf]
    %v78 = vld [vmem:[#allocation5 + $0x20] sm:$0xf]
    %v79 = vld [vmem:[#allocation5 + $0x24] sm:$0xf]
    %v80 = vld [vmem:[#allocation5 + $0x28] sm:$0xf]
    %v81 = vld [vmem:[#allocation5 + $0x2c] sm:$0xf]
    %v82 = vld [vmem:[#allocation5 + $0x30] sm:$0xf]
    %v83 = vld [vmem:[#allocation5 + $0x34] sm:$0xf]
    %v84 = vld [vmem:[#allocation5 + $0x38] sm:$0xf]
    %v85 = vld [vmem:[#allocation5 + $0x3c] sm:$0xf]
    %v86 = vld [vmem:[%s2] sm:$0x1]
    %v88 = vperm.slane %v86, 0
    %v92 = vunpack.c.l.b16 %v68
    %v93 = vunpack.c.l.b16 %v69
    %v94 = vpack.c.b16 %v93, %v92
    %v112 = vunpack.c.l.b16 %v70
    %v113 = vunpack.c.l.b16 %v71
    %v114 = vunpack.c.l.b16 %v72
    %v115 = vunpack.c.l.b16 %v73
    %v116 = vunpack.c.l.b16 %v74
    %v117 = vunpack.c.l.b16 %v75
    %v118 = vunpack.c.l.b16 %v76
    %v119 = vunpack.c.l.b16 %v77
    %v120 = vunpack.c.l.b16 %v78
    %v121 = vunpack.c.l.b16 %v79
    %v122 = vunpack.c.l.b16 %v80
    %v123 = vunpack.c.l.b16 %v81
    %v124 = vunpack.c.l.b16 %v82
    %v125 = vunpack.c.l.b16 %v83
    %v126 = vunpack.c.l.b16 %v84
    %v127 = vunpack.c.l.b16 %v85
    %v128 = vpack.c.b16 %v113, %v112
    %v129 = vpack.c.b16 %v115, %v114
    %v130 = vpack.c.b16 %v117, %v116
    %v131 = vpack.c.b16 %v119, %v118
    %v132 = vpack.c.b16 %v121, %v120
    %v133 = vpack.c.b16 %v123, %v122
    %v134 = vpack.c.b16 %v125, %v124
    %v135 = vpack.c.b16 %v127, %v126
    %144 = vmatpush.bf16.msra.mxu0 %v135
    %145 = vmatpush.bf16.msra.mxu0 %v134
    %146 = vmatpush.bf16.msra.mxu0 %v133
    %147 = vmatpush.bf16.msra.mxu0 %v132
    %148 = vmatpush.bf16.msra.mxu0 %v131
    %149 = vmatpush.bf16.msra.mxu0 %v130
    %150 = vmatpush.bf16.msra.mxu0 %v129
    %151 = vmatpush.bf16.msra.mxu0 %v128
    %152 = vmatmul.bf16.gmra.mxu0 %v94
    %v153 = vpop.f32.mrf.mxu0
    %v154 = vadd.f32 %v88, %v153
    %v155 = vpop.f32.mrf.mxu0
    %v156 = vadd.f32 %v88, %v155
    %157 = vdwg.mxu0
    %v158 = vmul.f32 %v154, 0.5
    %v159 = vmul.f32 %v156, 0.5
    %v160 = vmul.f32 %v154, 0.70710677
    %v161 = vmul.f32 %v156, 0.70710677
    %v162 = vmul.f32 %v160, %v160
    %v163 = vmin.f32 16.0, %v162
    %v164 = vmul.f32 %v163, 2.1237322e-06
    %v165 = vadd.f32 %v164, 0.00028619796
    %v166 = vmul.f32 %v163, %v165
    %v167 = vadd.f32 %v166, 0.0036580483
    %v168 = vmul.f32 %v163, %v167
    %v169 = vadd.f32 %v168, 0.05243302
    %v170 = vmul.f32 %v163, %v169
    %v171 = vadd.f32 %v170, 0.18741608
    %v172 = vmul.f32 %v163, %v171
    %v173 = vadd.f32 %v172, 1.1283791
    %v174 = vmul.f32 %v160, %v173
    %v175 = vmul.f32 %v163, 3.8918573e-05
    %v176 = vadd.f32 %v175, 0.001143296
    %v177 = vmul.f32 %v163, %v176
    %v178 = vadd.f32 %v177, 0.014752088
    %v179 = vmul.f32 %v163, %v178
    %v180 = vadd.f32 %v179, 0.112945676
    %v181 = vmul.f32 %v163, %v180
    %v182 = vadd.f32 %v181, 0.4994258
    %v183 = vmul.f32 %v163, %v182
    %v184 = vadd.f32 %v183, 1.0
    %v185 = vrcp.pop %v184
    %v186 = vmul.f32 %v184, %v185
    %v187 = vsub.f32 1.0, %v186
    %v188 = vmul.f32 %v185, %v187
    %v189 = vadd.f32 %v185, %v188
    %vm190 = vweird.f32 %v184
    %vm191 = vweird.f32 %v185
    %vm192 = vmor %vm190, %vm191
    %v193 = vsel %vm192, %v185, %v189
    %v194 = vand.u32 2147483647, %v184
    %vm195 = vcmp.eq.f32.partialorder %v194, 8.507059e+37
    %v196 = vand.u32 %v184, 2147483648
    %v197 = vor.u32 1.1754944e-38, %v196
    %v198 = vsel %vm195, %v197, %v193
    %v199 = vmul.f32 %v174, %v198
    %v200 = vmin.f32 %v199, 1.0
    %v201 = vmax.f32 %v200, -1.0
    %v202 = vmul.f32 %v161, %v161
    %v203 = vmin.f32 16.0, %v202
    %v204 = vmul.f32 %v203, 2.1237322e-06
    %v205 = vadd.f32 %v204, 0.00028619796
    %v206 = vmul.f32 %v203, %v205
    %v207 = vadd.f32 %v206, 0.0036580483
    %v208 = vmul.f32 %v203, %v207
    %v209 = vadd.f32 %v208, 0.05243302
    %v210 = vmul.f32 %v203, %v209
    %v211 = vadd.f32 %v210, 0.18741608
    %v212 = vmul.f32 %v203, %v211
    %v213 = vadd.f32 %v212, 1.1283791
    %v214 = vmul.f32 %v161, %v213
    %v215 = vmul.f32 %v203, 3.8918573e-05
    %v216 = vadd.f32 %v215, 0.001143296
    %v217 = vmul.f32 %v203, %v216
    %v218 = vadd.f32 %v217, 0.014752088
    %v219 = vmul.f32 %v203, %v218
    %v220 = vadd.f32 %v219, 0.112945676
    %v221 = vmul.f32 %v203, %v220
    %v222 = vadd.f32 %v221, 0.4994258
    %v223 = vmul.f32 %v203, %v222
    %v224 = vadd.f32 %v223, 1.0
    %v225 = vrcp.pop %v224
    %v226 = vmul.f32 %v224, %v225
    %v227 = vsub.f32 1.0, %v226
    %v228 = vmul.f32 %v225, %v227
    %v229 = vadd.f32 %v225, %v228
    %vm230 = vweird.f32 %v224
    %vm231 = vweird.f32 %v225
    %vm232 = vmor %vm230, %vm231
    %v233 = vsel %vm232, %v225, %v229
    %v234 = vand.u32 2147483647, %v224
    %vm235 = vcmp.eq.f32.partialorder %v234, 8.507059e+37
    %v236 = vand.u32 %v224, 2147483648
    %v237 = vor.u32 1.1754944e-38, %v236
    %v238 = vsel %vm235, %v237, %v233
    %v239 = vmul.f32 %v214, %v238
    %v240 = vmin.f32 %v239, 1.0
    %v241 = vmax.f32 %v240, -1.0
    %v242 = vadd.f32 %v201, 1.0
    %v243 = vadd.f32 %v241, 1.0
    %v244 = vmul.f32 %v158, %v242
    %v245 = vmul.f32 %v159, %v243
    %v246 = vpack.c.bf16 %v245, %v244
    %v247 = vld [vmem:[#allocation7] sm:$0xf]
    %v248 = vld [vmem:[#allocation7 + $0x4] sm:$0xf]
    %v249 = vld [vmem:[#allocation7 + $0x8] sm:$0xf]
    %v250 = vld [vmem:[#allocation7 + $0xc] sm:$0xf]
    %v251 = vld [vmem:[#allocation7 + $0x10] sm:$0xf]
    %v252 = vld [vmem:[#allocation7 + $0x14] sm:$0xf]
    %v253 = vld [vmem:[#allocation7 + $0x18] sm:$0xf]
    %v254 = vld [vmem:[#allocation7 + $0x1c] sm:$0xf]
    %v255 = vld [vmem:[#allocation7 + $0x20] sm:$0xf]
    %v256 = vld [vmem:[#allocation7 + $0x24] sm:$0xf]
    %v257 = vld [vmem:[#allocation7 + $0x28] sm:$0xf]
    %v258 = vld [vmem:[#allocation7 + $0x2c] sm:$0xf]
    %v259 = vld [vmem:[#allocation7 + $0x30] sm:$0xf]
    %v260 = vld [vmem:[#allocation7 + $0x34] sm:$0xf]
    %v261 = vld [vmem:[#allocation7 + $0x38] sm:$0xf]
    %v262 = vld [vmem:[#allocation7 + $0x3c] sm:$0xf]
    %v263 = vld [vmem:[%s4] sm:$0x1]
    %v265 = vperm.slane %v263, 0
    %v283 = vunpack.c.l.b16 %v247
    %v284 = vunpack.c.l.b16 %v248
    %v285 = vunpack.c.l.b16 %v249
    %v286 = vunpack.c.l.b16 %v250
    %v287 = vunpack.c.l.b16 %v251
    %v288 = vunpack.c.l.b16 %v252
    %v289 = vunpack.c.l.b16 %v253
    %v290 = vunpack.c.l.b16 %v254
    %v291 = vunpack.c.l.b16 %v255
    %v292 = vunpack.c.l.b16 %v256
    %v293 = vunpack.c.l.b16 %v257
    %v294 = vunpack.c.l.b16 %v258
    %v295 = vunpack.c.l.b16 %v259
    %v296 = vunpack.c.l.b16 %v260
    %v297 = vunpack.c.l.b16 %v261
    %v298 = vunpack.c.l.b16 %v262
    %v299 = vpack.c.b16 %v284, %v283
    %v300 = vpack.c.b16 %v286, %v285
    %v301 = vpack.c.b16 %v288, %v287
    %v302 = vpack.c.b16 %v290, %v289
    %v303 = vpack.c.b16 %v292, %v291
    %v304 = vpack.c.b16 %v294, %v293
    %v305 = vpack.c.b16 %v296, %v295
    %v306 = vpack.c.b16 %v298, %v297
    %315 = vmatpush.bf16.msra.mxu0 %v306
    %316 = vmatpush.bf16.msra.mxu0 %v305
    %317 = vmatpush.bf16.msra.mxu0 %v304
    %318 = vmatpush.bf16.msra.mxu0 %v303
    %319 = vmatpush.bf16.msra.mxu0 %v302
    %320 = vmatpush.bf16.msra.mxu0 %v301
    %321 = vmatpush.bf16.msra.mxu0 %v300
    %322 = vmatpush.bf16.msra.mxu0 %v299
    %323 = vmatmul.bf16.gmra.mxu0 %v246
    %v324 = vpop.f32.mrf.mxu0
    %v325 = vadd.f32 %v265, %v324
    %v326 = vpop.f32.mrf.mxu0
    %v327 = vadd.f32 %v265, %v326
    %328 = vdwg.mxu0
    %329 = vst [vmem:[#allocation8] sm:$0xff] %v325
    %330 = vst [vmem:[#allocation8 + $0x8] sm:$0xff] %v327
    // Predicated region
    $region34: #{tpu_custom_call.1} parent=1 // pred_check
      _
    $region35: #{tpu_custom_call.1} parent=1 // pred_check_branch
      %332 = sbr.rel (0) target = $region37
    $region36: #{tpu_custom_call.1} parent=1 // pred_region
      %334 = vsyncadd [#allocation4], 0
      %s335 = sshll.u32 [#allocation8], 4
      %s336 = int_to_ptr.vmem [resolvable:$true] %s335
      %s337 = sshll.u32 %s5, 4
      %s338 = int_to_ptr.hbm [resolvable:$true] %s337
      %343 = dma.vmem_to_hbm [thread:$0]  %s336, 256, %s338, [#allocation4], 128, 128, 8
    $region37: #{tpu_custom_call.1} parent=1 // pred_fallthru
      _
    // Predicated region
    $region38: #{tpu_custom_call.1} parent=1 // pred_check
      _
    $region39: #{tpu_custom_call.1} parent=1 // pred_check_branch
      %345 = sbr.rel (0) target = $region41
    $region40: #{tpu_custom_call.1} parent=1 // pred_region
      %347 = dma.done [#allocation4], 256
    $region41: #{tpu_custom_call.1} parent=1 // pred_fallthru
      _
    %348 = vsyncpa [#allocation3], 1
    %349 = vsyncpa [#allocation6], 1
    %350 = vsyncpa [#allocation4], 1

</llo_original>
